<compile_context>
chip_gen: v5e
topology: v5e:2x2
jax: 0.10.0
libtpu: 0.0.40
codegen_flags: <defaults>
</compile_context>

<pallas_src>
import functools

import jax
import jax.numpy as jnp
from jax import lax
from jax.experimental import pallas as pl
from jax.experimental.pallas import tpu as pltpu


_GRAM_DIMS = (((1,), (1,)), ((), ()))  # contract last (lane) axis of both operands

# (streamed-input budget, scoped-vmem limit) fallback, safe on every chip.
_DEFAULT_BUDGETS = (16 * 1024 * 1024, 48 * 1024 * 1024)


# ---------------------------------------------------------------------------
# Chip-dependent VMEM budgets
# ---------------------------------------------------------------------------
@functools.lru_cache(maxsize=None)
def _vmem_budgets():
    """Return (streamed_input_budget_bytes, vmem_limit_bytes) for this chip."""
    cap = None
    try:
        info = pltpu.get_tpu_info()
        for name in ("vmem_capacity_bytes", "vmem_size_bytes", "vmem_bytes"):
            val = getattr(info, name, None)
            if val:
                cap = int(val)
                break
    except Exception:
        cap = None
    if cap is None:
        return _DEFAULT_BUDGETS
    if cap >= 100 * 1024 * 1024:
        # v5e / v6e: 128 MiB physical VMEM -> big tiles, fewer grid steps.
        return 48 * 1024 * 1024, 96 * 1024 * 1024
    # v7x: 64 MiB physical VMEM -> moderate tiles, keep limit <= ~48 MiB.
    return 20 * 1024 * 1024, 48 * 1024 * 1024


def _compiler_params():
    _, vmem_limit = _vmem_budgets()
    return pltpu.CompilerParams(
        dimension_semantics=("parallel", "arbitrary"),
        vmem_limit_bytes=vmem_limit,
    )


# ---------------------------------------------------------------------------
# Tiling helpers
# ---------------------------------------------------------------------------
def _hw_tiling(hw, c, n_stream, tile_hw=None, elem_bytes=4):
    """Pick an HW tile (full extent, or a multiple of 128) under the budget.

    Returns (tile, n_tiles).  The last tile may be partial (masked in-kernel)."""
    stream_budget, _ = _vmem_budgets()
    if tile_hw is None:
        per_block = stream_budget // (2 * n_stream)  # 2 = double buffering
        max_tile = max(128, per_block // (c * elem_bytes))
        if hw <= max_tile:
            return hw, 1                 # single full tile; no (8,128) issue
        tile_hw = (max_tile // 128) * 128
    else:
        if tile_hw >= hw:
            return hw, 1
        tile_hw = max(128, (tile_hw // 128) * 128)
    return tile_hw, pl.cdiv(hw, tile_hw)


def _lane_width(tile):
    """Width of the lane-block accumulators."""
    return 128 if tile % 128 == 0 else 1


# ---------------------------------------------------------------------------
# In-kernel helpers
# ---------------------------------------------------------------------------
def _hw_mask(j, tile, hw):
    """(1, tile) mask of in-range HW lanes, or None when tiling is exact."""
    if hw % tile == 0:
        return None
    rem = hw - j * tile                                   # >= tile except last step
    lane = lax.broadcasted_iota(jnp.int32, (1, tile), 1)
    return lane < rem


def _masked_f32(ref, mask):
    """Load the (C, tile) feature tile as f32, zeroing out-of-range lanes."""
    x = ref[0].astype(jnp.float32)
    if mask is None:
        return x
    return jnp.where(mask, x, 0.0)


def _lane_reduce(x, lw):
    """Reduce (C, tile) -> (C, lw) summing 128-lane blocks.

    lw == 128: pure VPU lane-block adds (log depth), no XLU in steady state.
    lw == 1  : full per-channel reduce (only used when there is a single tile)."""
    if lw == 1:
        return jnp.sum(x, axis=1, keepdims=True)
    w = x.shape[1]
    nb = w // 128
    tail = None
    while nb > 1:
        if nb % 2 == 1:                       # fold the odd trailing block aside
            last = x[:, (nb - 1) * 128:]
            tail = last if tail is None else tail + last
            nb -= 1
            x = x[:, : nb * 128]
        half = (nb // 2) * 128
        x = x[:, :half] + x[:, half:]
        nb //= 2
    return x if tail is None else x + tail


# ---------------------------------------------------------------------------
# Kernels
# ---------------------------------------------------------------------------
def _content_kernel(tf_ref, cf_ref, out_ref, ssd_ref, *, hw, tile, lw):
    """Per-batch sum of squared differences, accumulated over HW tiles."""
    j = pl.program_id(1)

    @pl.when(j == 0)
    def _():
        ssd_ref[...] = jnp.zeros_like(ssd_ref)

    mask = _hw_mask(j, tile, hw)
    tf = _masked_f32(tf_ref, mask)
    cf = _masked_f32(cf_ref, mask)
    d = tf - cf
    ssd_ref[...] += _lane_reduce(d * d, lw)

    @pl.when(j == pl.num_programs(1) - 1)
    def _():
        out_ref[...] = jnp.zeros_like(out_ref) + jnp.sum(ssd_ref[...])


def _style_kernel(tf_ref, sf_ref, out_ref,
                  tg_ref, sg_ref, ts_ref, ss_ref,
                  *, c, hw, tile, lw, gram_dtype):
    """Per-batch styleLoss term: ||mean_t - mean_s||^2 + ||Gram_t - Gram_s||^2."""
    j = pl.program_id(1)

    @pl.when(j == 0)
    def _():
        tg_ref[...] = jnp.zeros_like(tg_ref)
        sg_ref[...] = jnp.zeros_like(sg_ref)
        ts_ref[...] = jnp.zeros_like(ts_ref)
        ss_ref[...] = jnp.zeros_like(ss_ref)

    mask = _hw_mask(j, tile, hw)
    tf = _masked_f32(tf_ref, mask)
    sf = _masked_f32(sf_ref, mask)

    tg_op = tf if gram_dtype is None else tf.astype(gram_dtype)
    sg_op = sf if gram_dtype is None else sf.astype(gram_dtype)
    # Transpose-free Gram partials (contract the lane-major HW axis of both).
    tg_ref[...] += lax.dot_general(tg_op, tg_op, _GRAM_DIMS,
                                   preferred_element_type=jnp.float32)
    sg_ref[...] += lax.dot_general(sg_op, sg_op, _GRAM_DIMS,
                                   preferred_element_type=jnp.float32)
    ts_ref[...] += _lane_reduce(tf, lw)
    ss_ref[...] += _lane_reduce(sf, lw)

    @pl.when(j == pl.num_programs(1) - 1)
    def _():
        inv_hw = 1.0 / float(hw)
        inv_chw = 1.0 / float(c * hw)
        dm = jnp.sum(ts_ref[...] - ss_ref[...], axis=1, keepdims=True) * inv_hw
        dg = (tg_ref[...] - sg_ref[...]) * inv_chw
        total = jnp.sum(dm * dm) + jnp.sum(dg * dg)
        out_ref[...] = jnp.zeros_like(out_ref) + total


def _fused_kernel(tf_ref, sf_ref, cf_ref, style_out_ref, ssd_out_ref,
                  tg_ref, sg_ref, ts_ref, ss_ref, ssd_ref,
                  *, c, hw, tile, lw, gram_dtype):
    """Style + content terms for a layer used by both, reading tF once."""
    j = pl.program_id(1)

    @pl.when(j == 0)
    def _():
        tg_ref[...] = jnp.zeros_like(tg_ref)
        sg_ref[...] = jnp.zeros_like(sg_ref)
        ts_ref[...] = jnp.zeros_like(ts_ref)
        ss_ref[...] = jnp.zeros_like(ss_ref)
        ssd_ref[...] = jnp.zeros_like(ssd_ref)

    mask = _hw_mask(j, tile, hw)
    tf = _masked_f32(tf_ref, mask)
    sf = _masked_f32(sf_ref, mask)
    cf = _masked_f32(cf_ref, mask)

    tg_op = tf if gram_dtype is None else tf.astype(gram_dtype)
    sg_op = sf if gram_dtype is None else sf.astype(gram_dtype)
    tg_ref[...] += lax.dot_general(tg_op, tg_op, _GRAM_DIMS,
                                   preferred_element_type=jnp.float32)
    sg_ref[...] += lax.dot_general(sg_op, sg_op, _GRAM_DIMS,
                                   preferred_element_type=jnp.float32)
    ts_ref[...] += _lane_reduce(tf, lw)
    ss_ref[...] += _lane_reduce(sf, lw)

    d = tf - cf
    ssd_ref[...] += _lane_reduce(d * d, lw)

    @pl.when(j == pl.num_programs(1) - 1)
    def _():
        inv_hw = 1.0 / float(hw)
        inv_chw = 1.0 / float(c * hw)
        dm = jnp.sum(ts_ref[...] - ss_ref[...], axis=1, keepdims=True) * inv_hw
        dg = (tg_ref[...] - sg_ref[...]) * inv_chw
        style_total = jnp.sum(dm * dm) + jnp.sum(dg * dg)
        style_out_ref[...] = jnp.zeros_like(style_out_ref) + style_total
        ssd_out_ref[...] = jnp.zeros_like(ssd_out_ref) + jnp.sum(ssd_ref[...])


# ---------------------------------------------------------------------------
# Wrappers
# ---------------------------------------------------------------------------
def content_loss(tf, cf, *, tile_hw=None):
    """nn.MSELoss() (mean over all elements) between tf and cf."""
    b, c, h, w = tf.shape
    hw = h * w
    tile, n_tiles = _hw_tiling(hw, c, n_stream=2, tile_hw=tile_hw)
    lw = _lane_width(tile)
    tf3 = tf.reshape(b, c, hw)
    cf3 = cf.reshape(b, c, hw)

    kernel = functools.partial(_content_kernel, hw=hw, tile=tile, lw=lw)
    part = pl.pallas_call(
        kernel,
        out_shape=jax.ShapeDtypeStruct((b, 8, 128), jnp.float32),
        grid_spec=pltpu.PrefetchScalarGridSpec(
            num_scalar_prefetch=0,
            grid=(b, n_tiles),
            in_specs=[
                pl.BlockSpec((1, c, tile), lambda i, j: (i, 0, j)),
                pl.BlockSpec((1, c, tile), lambda i, j: (i, 0, j)),
            ],
            out_specs=pl.BlockSpec((1, 8, 128), lambda i, j: (i, 0, 0)),
            scratch_shapes=[pltpu.VMEM((c, lw), jnp.float32)],
        ),
        compiler_params=_compiler_params(),
        cost_estimate=pl.CostEstimate(
            flops=3 * b * c * hw,
            transcendentals=0,
            bytes_accessed=2 * b * c * hw * tf.dtype.itemsize + b * 8 * 128 * 4),
    )(tf3, cf3)
    return jnp.sum(part[:, 0, 0]) / float(b * c * h * w)


def style_loss(tf, sf, *, tile_hw=None, gram_dtype=None):
    """styleLoss: MSE(size_average=False) on channel means + Gram matrices, /B."""
    b, c, h, w = tf.shape
    hw = h * w
    tile, n_tiles = _hw_tiling(hw, c, n_stream=2, tile_hw=tile_hw)
    lw = _lane_width(tile)
    tf3 = tf.reshape(b, c, hw)
    sf3 = sf.reshape(b, c, hw)

    kernel = functools.partial(_style_kernel, c=c, hw=hw, tile=tile, lw=lw,
                               gram_dtype=gram_dtype)
    part = pl.pallas_call(
        kernel,
        out_shape=jax.ShapeDtypeStruct((b, 8, 128), jnp.float32),
        grid_spec=pltpu.PrefetchScalarGridSpec(
            num_scalar_prefetch=0,
            grid=(b, n_tiles),
            in_specs=[
                pl.BlockSpec((1, c, tile), lambda i, j: (i, 0, j)),
                pl.BlockSpec((1, c, tile), lambda i, j: (i, 0, j)),
            ],
            out_specs=pl.BlockSpec((1, 8, 128), lambda i, j: (i, 0, 0)),
            scratch_shapes=[
                pltpu.VMEM((c, c), jnp.float32),
                pltpu.VMEM((c, c), jnp.float32),
                pltpu.VMEM((c, lw), jnp.float32),
                pltpu.VMEM((c, lw), jnp.float32),
            ],
        ),
        compiler_params=_compiler_params(),
        cost_estimate=pl.CostEstimate(
            flops=2 * 2 * b * c * c * hw,
            transcendentals=0,
            bytes_accessed=2 * b * c * hw * tf.dtype.itemsize + b * 8 * 128 * 4),
    )(tf3, sf3)
    return jnp.sum(part[:, 0, 0]) / float(b)


def style_and_content_loss(tf, sf, cf, *, tile_hw=None, gram_dtype=None):
    """Fused style + content losses for a layer present in both lists
    (tF streamed from HBM once). Returns (style_term, content_term)."""
    b, c, h, w = tf.shape
    hw = h * w
    tile, n_tiles = _hw_tiling(hw, c, n_stream=3, tile_hw=tile_hw)
    lw = _lane_width(tile)
    tf3 = tf.reshape(b, c, hw)
    sf3 = sf.reshape(b, c, hw)
    cf3 = cf.reshape(b, c, hw)

    kernel = functools.partial(_fused_kernel, c=c, hw=hw, tile=tile, lw=lw,
                               gram_dtype=gram_dtype)
    style_part, ssd_part = pl.pallas_call(
        kernel,
        out_shape=(jax.ShapeDtypeStruct((b, 8, 128), jnp.float32),
                   jax.ShapeDtypeStruct((b, 8, 128), jnp.float32)),
        grid_spec=pltpu.PrefetchScalarGridSpec(
            num_scalar_prefetch=0,
            grid=(b, n_tiles),
            in_specs=[
                pl.BlockSpec((1, c, tile), lambda i, j: (i, 0, j)),
                pl.BlockSpec((1, c, tile), lambda i, j: (i, 0, j)),
                pl.BlockSpec((1, c, tile), lambda i, j: (i, 0, j)),
            ],
            out_specs=[
                pl.BlockSpec((1, 8, 128), lambda i, j: (i, 0, 0)),
                pl.BlockSpec((1, 8, 128), lambda i, j: (i, 0, 0)),
            ],
            scratch_shapes=[
                pltpu.VMEM((c, c), jnp.float32),
                pltpu.VMEM((c, c), jnp.float32),
                pltpu.VMEM((c, lw), jnp.float32),
                pltpu.VMEM((c, lw), jnp.float32),
                pltpu.VMEM((c, lw), jnp.float32),
            ],
        ),
        compiler_params=_compiler_params(),
        cost_estimate=pl.CostEstimate(
            flops=2 * 2 * b * c * c * hw + 3 * b * c * hw,
            transcendentals=0,
            bytes_accessed=3 * b * c * hw * tf.dtype.itemsize + 2 * b * 8 * 128 * 4),
    )(tf3, sf3, cf3)

    style = jnp.sum(style_part[:, 0, 0]) / float(b)
    content = jnp.sum(ssd_part[:, 0, 0]) / float(b * c * h * w)
    return style, content


class LossCriterion:
    """JAX/Pallas equivalent of LinearStyleTransfer's LossCriterion."""

    def __init__(self, style_layers, content_layers, style_weight, content_weight):
        self.style_layers = style_layers
        self.content_layers = content_layers
        self.style_weight = style_weight
        self.content_weight = content_weight

    def __call__(self, tF, sF, cF):
        content_terms = {}
        style_terms = {}

        # Fused path for layers that contribute to BOTH losses (read tF once).
        for layer in self.content_layers:
            if layer in self.style_layers:
                s_l, c_l = style_and_content_loss(
                    tF[layer],
                    jax.lax.stop_gradient(sF[layer]),   # .detach()
                    jax.lax.stop_gradient(cF[layer]))   # .detach()
                style_terms[layer] = s_l
                content_terms[layer] = c_l

        for layer in self.content_layers:
            if layer not in content_terms:
                content_terms[layer] = content_loss(
                    tF[layer], jax.lax.stop_gradient(cF[layer]))

        for layer in self.style_layers:
            if layer not in style_terms:
                style_terms[layer] = style_loss(
                    tF[layer], jax.lax.stop_gradient(sF[layer]))

        total_content = jnp.float32(0.0)
        for layer in self.content_layers:
            total_content = total_content + content_terms[layer]
        total_content = total_content * self.content_weight

        total_style = jnp.float32(0.0)
        for layer in self.style_layers:
            total_style = total_style + style_terms[layer]
        total_style = total_style * self.style_weight

        loss = total_style + total_content
        return loss, total_style, total_content


# ---------------------------------------------------------------------------
# Pure-JAX reference (for verification only)
# ---------------------------------------------------------------------------
def _ref_style(tf, sf):
    b, c, h, w = tf.shape
    iF = tf.reshape(b, c, -1)
    tFr = sf.reshape(b, c, -1)
    iMean, tMean = iF.mean(-1), tFr.mean(-1)
    hp = lax.Precision.HIGHEST
    iCov = jnp.einsum('bci,bdi->bcd', iF, iF, precision=hp) / (c * h * w)
    tCov = jnp.einsum('bci,bdi->bcd', tFr, tFr, precision=hp) / (c * h * w)
    return (jnp.sum((iMean - tMean) ** 2) + jnp.sum((iCov - tCov) ** 2)) / b


def _ref_criterion(tF, sF, cF, style_layers, content_layers, sw, cw):
    tc = sum(jnp.mean((tF[l] - cF[l]) ** 2) for l in content_layers) * cw
    ts = sum(_ref_style(tF[l], sF[l]) for l in style_layers) * sw
    return ts + tc, ts, tc


# ---------------------------------------------------------------------------
if __name__ == "__main__":
    key = jax.random.PRNGKey(0)

    # Small VGG-style feature pyramid (NCHW).
    shapes = {"r11": (2, 4, 16, 16), "r21": (2, 8, 8, 8)}
    style_layers = ["r11", "r21"]
    content_layers = ["r21"]
    style_weight, content_weight = 0.02, 0.5

    keys = jax.random.split(key, 3 * len(shapes) + 3)
    tF, sF, cF = {}, {}, {}
    for idx, (name, shp) in enumerate(shapes.items()):
        tF[name] = jax.random.normal(keys[3 * idx + 0], shp, dtype=jnp.float32)
        sF[name] = jax.random.normal(keys[3 * idx + 1], shp, dtype=jnp.float32)
        cF[name] = jax.random.normal(keys[3 * idx + 2], shp, dtype=jnp.float32)

    crit = LossCriterion(style_layers, content_layers, style_weight, content_weight)
    loss, style_l, content_l = crit(tF, sF, cF)
    jax.block_until_ready((loss, style_l, content_l))

    ref_loss, ref_style_l, ref_content_l = _ref_criterion(
        tF, sF, cF, style_layers, content_layers, style_weight, content_weight)

    assert jnp.allclose(loss, ref_loss, rtol=2e-5, atol=2e-5), (loss, ref_loss)
    assert jnp.allclose(style_l, ref_style_l, rtol=2e-5, atol=2e-5)
    assert jnp.allclose(content_l, ref_content_l, rtol=2e-5, atol=2e-5)

    # Exercise the HW-tiled + in-kernel-masked path (H*W = 320 is not a
    # multiple of 128; forced tile of 128 -> 3 HW tiles, last one partial).
    x_shape = (2, 8, 16, 20)
    xt = jax.random.normal(keys[-3], x_shape, dtype=jnp.float32)
    xs = jax.random.normal(keys[-2], x_shape, dtype=jnp.float32)
    xc = jax.random.normal(keys[-1], x_shape, dtype=jnp.float32)

    s_fused, c_fused = style_and_content_loss(xt, xs, xc, tile_hw=128)
    s_only = style_loss(xt, xs, tile_hw=128)
    c_only = content_loss(xt, xc, tile_hw=128)
    jax.block_until_ready((s_fused, c_fused, s_only, c_only))

    assert jnp.allclose(s_fused, _ref_style(xt, xs), rtol=2e-5, atol=2e-5)
    assert jnp.allclose(c_fused, jnp.mean((xt - xc) ** 2), rtol=2e-5, atol=2e-5)
    assert jnp.allclose(s_only, _ref_style(xt, xs), rtol=2e-5, atol=2e-5)
    assert jnp.allclose(c_only, jnp.mean((xt - xc) ** 2), rtol=2e-5, atol=2e-5)

    print("KERNEL_OK")
</pallas_src>

<mosaic_0001>
module attributes {stable_mosaic.version = 11 : i64} {
  func.func @_fused_kernel(%arg0: i32, %arg1: i32, %arg2: memref<1x8x64xf32, #tpu.memory_space<vmem>>, %arg3: memref<1x8x64xf32, #tpu.memory_space<vmem>>, %arg4: memref<1x8x64xf32, #tpu.memory_space<vmem>>, %arg5: memref<1x8x128xf32, #tpu.memory_space<vmem>>, %arg6: memref<1x8x128xf32, #tpu.memory_space<vmem>>, %arg7: memref<8x8xf32, #tpu.memory_space<vmem>>, %arg8: memref<8x8xf32, #tpu.memory_space<vmem>>, %arg9: memref<8x1xf32, #tpu.memory_space<vmem>>, %arg10: memref<8x1xf32, #tpu.memory_space<vmem>>, %arg11: memref<8x1xf32, #tpu.memory_space<vmem>>) attributes {dimension_semantics = [#tpu.dimension_semantics<parallel>, #tpu.dimension_semantics<arbitrary>], iteration_bounds = array<i64: 2, 1>, scalar_prefetch = 0 : i64, scratch_operands = 5 : i64, tpu.core_type = #tpu.core_type<tc>, window_params = [{transform_indices = @transform_0, window_bounds = array<i64: 1, 8, 64>}, {transform_indices = @transform_1, window_bounds = array<i64: 1, 8, 64>}, {transform_indices = @transform_2, window_bounds = array<i64: 1, 8, 64>}, {transform_indices = @transform_3, window_bounds = array<i64: 1, 8, 128>}, {transform_indices = @transform_4, window_bounds = array<i64: 1, 8, 128>}]} {
    %c0_i32 = arith.constant 0 : i32
    %0 = arith.cmpi eq, %arg1, %c0_i32 : i32
    %1 = arith.extui %0 : i1 to i32
    %c0_i32_0 = arith.constant 0 : i32
    %2 = arith.cmpi ne, %1, %c0_i32_0 : i32
    scf.if %2 {
      %cst_35 = arith.constant 0.000000e+00 : f32
      %37 = vector.broadcast %cst_35 : f32 to vector<8x8xf32>
      %c0_36 = arith.constant 0 : index
      %c0_37 = arith.constant 0 : index
      %38 = vector.load %arg7[%c0_36, %c0_37] : memref<8x8xf32, #tpu.memory_space<vmem>>, vector<8x8xf32>
      tpu.vector_store %arg7[%c0_36, %c0_37], %37 {strides = array<i32>} : memref<8x8xf32, #tpu.memory_space<vmem>>, vector<8x8xf32>,
      %cst_38 = arith.constant 0.000000e+00 : f32
      %39 = vector.broadcast %cst_38 : f32 to vector<8x8xf32>
      %c0_39 = arith.constant 0 : index
      %c0_40 = arith.constant 0 : index
      %40 = vector.load %arg8[%c0_39, %c0_40] : memref<8x8xf32, #tpu.memory_space<vmem>>, vector<8x8xf32>
      tpu.vector_store %arg8[%c0_39, %c0_40], %39 {strides = array<i32>} : memref<8x8xf32, #tpu.memory_space<vmem>>, vector<8x8xf32>,
      %cst_41 = arith.constant 0.000000e+00 : f32
      %41 = vector.broadcast %cst_41 : f32 to vector<8x1xf32>
      %c0_42 = arith.constant 0 : index
      %c0_43 = arith.constant 0 : index
      %42 = vector.load %arg9[%c0_42, %c0_43] : memref<8x1xf32, #tpu.memory_space<vmem>>, vector<8x1xf32>
      tpu.vector_store %arg9[%c0_42, %c0_43], %41 {strides = array<i32>} : memref<8x1xf32, #tpu.memory_space<vmem>>, vector<8x1xf32>,
      %cst_44 = arith.constant 0.000000e+00 : f32
      %43 = vector.broadcast %cst_44 : f32 to vector<8x1xf32>
      %c0_45 = arith.constant 0 : index
      %c0_46 = arith.constant 0 : index
      %44 = vector.load %arg10[%c0_45, %c0_46] : memref<8x1xf32, #tpu.memory_space<vmem>>, vector<8x1xf32>
      tpu.vector_store %arg10[%c0_45, %c0_46], %43 {strides = array<i32>} : memref<8x1xf32, #tpu.memory_space<vmem>>, vector<8x1xf32>,
      %cst_47 = arith.constant 0.000000e+00 : f32
      %45 = vector.broadcast %cst_47 : f32 to vector<8x1xf32>
      %c0_48 = arith.constant 0 : index
      %c0_49 = arith.constant 0 : index
      %46 = vector.load %arg11[%c0_48, %c0_49] : memref<8x1xf32, #tpu.memory_space<vmem>>, vector<8x1xf32>
      tpu.vector_store %arg11[%c0_48, %c0_49], %45 {strides = array<i32>} : memref<8x1xf32, #tpu.memory_space<vmem>>, vector<8x1xf32>,
    } else {
    }
    %c0 = arith.constant 0 : index
    %c0_1 = arith.constant 0 : index
    %c0_2 = arith.constant 0 : index
    %3 = vector.load %arg2[%c0, %c0_1, %c0_2] : memref<1x8x64xf32, #tpu.memory_space<vmem>>, vector<1x8x64xf32>
    %4 = vector.shape_cast %3 : vector<1x8x64xf32> to vector<8x64xf32>
    %c0_3 = arith.constant 0 : index
    %c0_4 = arith.constant 0 : index
    %c0_5 = arith.constant 0 : index
    %5 = vector.load %arg3[%c0_3, %c0_4, %c0_5] : memref<1x8x64xf32, #tpu.memory_space<vmem>>, vector<1x8x64xf32>
    %6 = vector.shape_cast %5 : vector<1x8x64xf32> to vector<8x64xf32>
    %c0_6 = arith.constant 0 : index
    %c0_7 = arith.constant 0 : index
    %c0_8 = arith.constant 0 : index
    %7 = vector.load %arg4[%c0_6, %c0_7, %c0_8] : memref<1x8x64xf32, #tpu.memory_space<vmem>>, vector<1x8x64xf32>
    %8 = vector.shape_cast %7 : vector<1x8x64xf32> to vector<8x64xf32>
    %c0_9 = arith.constant 0 : index
    %c0_10 = arith.constant 0 : index
    %9 = vector.load %arg7[%c0_9, %c0_10] : memref<8x8xf32, #tpu.memory_space<vmem>>, vector<8x8xf32>
    %cst = arith.constant dense<0.000000e+00> : vector<8x8xf32>
    %10 = tpu.matmul %4, %4, %cst {dimension_numbers = #tpu.dot_dimension_numbers<[1], [1], [0], [0], [0, 0, 1, 0], [], []>} : vector<8x64xf32>, vector<8x64xf32>, vector<8x8xf32> -> vector<8x8xf32>
    %11 = arith.addf %9, %10 : vector<8x8xf32>
    %c0_11 = arith.constant 0 : index
    %c0_12 = arith.constant 0 : index
    %12 = vector.load %arg7[%c0_11, %c0_12] : memref<8x8xf32, #tpu.memory_space<vmem>>, vector<8x8xf32>
    tpu.vector_store %arg7[%c0_11, %c0_12], %11 {strides = array<i32>} : memref<8x8xf32, #tpu.memory_space<vmem>>, vector<8x8xf32>,
    %c0_13 = arith.constant 0 : index
    %c0_14 = arith.constant 0 : index
    %13 = vector.load %arg8[%c0_13, %c0_14] : memref<8x8xf32, #tpu.memory_space<vmem>>, vector<8x8xf32>
    %cst_15 = arith.constant dense<0.000000e+00> : vector<8x8xf32>
    %14 = tpu.matmul %6, %6, %cst_15 {dimension_numbers = #tpu.dot_dimension_numbers<[1], [1], [0], [0], [0, 0, 1, 0], [], []>} : vector<8x64xf32>, vector<8x64xf32>, vector<8x8xf32> -> vector<8x8xf32>
    %15 = arith.addf %13, %14 : vector<8x8xf32>
    %c0_16 = arith.constant 0 : index
    %c0_17 = arith.constant 0 : index
    %16 = vector.load %arg8[%c0_16, %c0_17] : memref<8x8xf32, #tpu.memory_space<vmem>>, vector<8x8xf32>
    tpu.vector_store %arg8[%c0_16, %c0_17], %15 {strides = array<i32>} : memref<8x8xf32, #tpu.memory_space<vmem>>, vector<8x8xf32>,
    %c0_18 = arith.constant 0 : index
    %c0_19 = arith.constant 0 : index
    %17 = vector.load %arg9[%c0_18, %c0_19] : memref<8x1xf32, #tpu.memory_space<vmem>>, vector<8x1xf32>
    %cst_20 = arith.constant dense<0.000000e+00> : vector<8xf32>
    %18 = vector.multi_reduction <add>, %4, %cst_20 [1] : vector<8x64xf32> to vector<8xf32>
    %19 = vector.shape_cast %18 : vector<8xf32> to vector<8x1xf32>
    %20 = arith.addf %17, %19 : vector<8x1xf32>
    %c0_21 = arith.constant 0 : index
    %c0_22 = arith.constant 0 : index
    %21 = vector.load %arg9[%c0_21, %c0_22] : memref<8x1xf32, #tpu.memory_space<vmem>>, vector<8x1xf32>
    tpu.vector_store %arg9[%c0_21, %c0_22], %20 {strides = array<i32>} : memref<8x1xf32, #tpu.memory_space<vmem>>, vector<8x1xf32>,
    %c0_23 = arith.constant 0 : index
    %c0_24 = arith.constant 0 : index
    %22 = vector.load %arg10[%c0_23, %c0_24] : memref<8x1xf32, #tpu.memory_space<vmem>>, vector<8x1xf32>
    %cst_25 = arith.constant dense<0.000000e+00> : vector<8xf32>
    %23 = vector.multi_reduction <add>, %6, %cst_25 [1] : vector<8x64xf32> to vector<8xf32>
    %24 = vector.shape_cast %23 : vector<8xf32> to vector<8x1xf32>
    %25 = arith.addf %22, %24 : vector<8x1xf32>
    %c0_26 = arith.constant 0 : index
    %c0_27 = arith.constant 0 : index
    %26 = vector.load %arg10[%c0_26, %c0_27] : memref<8x1xf32, #tpu.memory_space<vmem>>, vector<8x1xf32>
    tpu.vector_store %arg10[%c0_26, %c0_27], %25 {strides = array<i32>} : memref<8x1xf32, #tpu.memory_space<vmem>>, vector<8x1xf32>,
    %27 = arith.subf %4, %8 : vector<8x64xf32>
    %c0_28 = arith.constant 0 : index
    %c0_29 = arith.constant 0 : index
    %28 = vector.load %arg11[%c0_28, %c0_29] : memref<8x1xf32, #tpu.memory_space<vmem>>, vector<8x1xf32>
    %29 = arith.mulf %27, %27 : vector<8x64xf32>
    %cst_30 = arith.constant dense<0.000000e+00> : vector<8xf32>
    %30 = vector.multi_reduction <add>, %29, %cst_30 [1] : vector<8x64xf32> to vector<8xf32>
    %31 = vector.shape_cast %30 : vector<8xf32> to vector<8x1xf32>
    %32 = arith.addf %28, %31 : vector<8x1xf32>
    %c0_31 = arith.constant 0 : index
    %c0_32 = arith.constant 0 : index
    %33 = vector.load %arg11[%c0_31, %c0_32] : memref<8x1xf32, #tpu.memory_space<vmem>>, vector<8x1xf32>
    tpu.vector_store %arg11[%c0_31, %c0_32], %32 {strides = array<i32>} : memref<8x1xf32, #tpu.memory_space<vmem>>, vector<8x1xf32>,
    %c0_i32_33 = arith.constant 0 : i32
    %34 = arith.cmpi eq, %arg1, %c0_i32_33 : i32
    %35 = arith.extui %34 : i1 to i32
    %c0_i32_34 = arith.constant 0 : i32
    %36 = arith.cmpi ne, %35, %c0_i32_34 : i32
    scf.if %36 {
      %c0_35 = arith.constant 0 : index
      %c0_36 = arith.constant 0 : index
      %37 = vector.load %arg9[%c0_35, %c0_36] : memref<8x1xf32, #tpu.memory_space<vmem>>, vector<8x1xf32>
      %c0_37 = arith.constant 0 : index
      %c0_38 = arith.constant 0 : index
      %38 = vector.load %arg10[%c0_37, %c0_38] : memref<8x1xf32, #tpu.memory_space<vmem>>, vector<8x1xf32>
      %39 = arith.subf %37, %38 : vector<8x1xf32>
      %cst_39 = arith.constant dense<0.000000e+00> : vector<8xf32>
      %40 = vector.multi_reduction <add>, %39, %cst_39 [1] : vector<8x1xf32> to vector<8xf32>
      %41 = vector.shape_cast %40 : vector<8xf32> to vector<8x1xf32>
      %cst_40 = arith.constant 1.562500e-02 : f32
      %42 = vector.broadcast %cst_40 : f32 to vector<8x1xf32>
      %43 = arith.mulf %41, %42 : vector<8x1xf32>
      %c0_41 = arith.constant 0 : index
      %c0_42 = arith.constant 0 : index
      %44 = vector.load %arg7[%c0_41, %c0_42] : memref<8x8xf32, #tpu.memory_space<vmem>>, vector<8x8xf32>
      %c0_43 = arith.constant 0 : index
      %c0_44 = arith.constant 0 : index
      %45 = vector.load %arg8[%c0_43, %c0_44] : memref<8x8xf32, #tpu.memory_space<vmem>>, vector<8x8xf32>
      %46 = arith.subf %44, %45 : vector<8x8xf32>
      %cst_45 = arith.constant 0.001953125 : f32
      %47 = vector.broadcast %cst_45 : f32 to vector<8x8xf32>
      %48 = arith.mulf %46, %47 : vector<8x8xf32>
      %49 = arith.mulf %43, %43 : vector<8x1xf32>
      %50 = vector.shape_cast %49 : vector<8x1xf32> to vector<1x8x1xf32>
      %cst_46 = arith.constant dense<0.000000e+00> : vector<1xf32>
      %51 = vector.multi_reduction <add>, %50, %cst_46 [1, 2] : vector<1x8x1xf32> to vector<1xf32>
      %52 = vector.shape_cast %51 : vector<1xf32> to vector<1x1x1xf32>
      %53 = vector.extract %52[0, 0, 0] : f32 from vector<1x1x1xf32>
      %54 = arith.mulf %48, %48 : vector<8x8xf32>
      %55 = vector.shape_cast %54 : vector<8x8xf32> to vector<1x8x8xf32>
      %cst_47 = arith.constant dense<0.000000e+00> : vector<1xf32>
      %56 = vector.multi_reduction <add>, %55, %cst_47 [1, 2] : vector<1x8x8xf32> to vector<1xf32>
      %57 = vector.shape_cast %56 : vector<1xf32> to vector<1x1x1xf32>
      %58 = vector.extract %57[0, 0, 0] : f32 from vector<1x1x1xf32>
      %59 = arith.addf %53, %58 : f32
      %cst_48 = arith.constant 0.000000e+00 : f32
      %60 = vector.broadcast %cst_48 : f32 to vector<1x8x128xf32>
      %61 = vector.broadcast %59 : f32 to vector<1x8x128xf32>
      %62 = arith.addf %60, %61 : vector<1x8x128xf32>
      %c0_49 = arith.constant 0 : index
      %c0_50 = arith.constant 0 : index
      %c0_51 = arith.constant 0 : index
      %63 = vector.load %arg5[%c0_49, %c0_50, %c0_51] : memref<1x8x128xf32, #tpu.memory_space<vmem>>, vector<1x8x128xf32>
      tpu.vector_store %arg5[%c0_49, %c0_50, %c0_51], %62 {strides = array<i32>} : memref<1x8x128xf32, #tpu.memory_space<vmem>>, vector<1x8x128xf32>,
      %cst_52 = arith.constant 0.000000e+00 : f32
      %64 = vector.broadcast %cst_52 : f32 to vector<1x8x128xf32>
      %c0_53 = arith.constant 0 : index
      %c0_54 = arith.constant 0 : index
      %65 = vector.load %arg11[%c0_53, %c0_54] : memref<8x1xf32, #tpu.memory_space<vmem>>, vector<8x1xf32>
      %66 = vector.shape_cast %65 : vector<8x1xf32> to vector<1x8x1xf32>
      %cst_55 = arith.constant dense<0.000000e+00> : vector<1xf32>
      %67 = vector.multi_reduction <add>, %66, %cst_55 [1, 2] : vector<1x8x1xf32> to vector<1xf32>
      %68 = vector.shape_cast %67 : vector<1xf32> to vector<1x1x1xf32>
      %69 = vector.extract %68[0, 0, 0] : f32 from vector<1x1x1xf32>
      %70 = vector.broadcast %69 : f32 to vector<1x8x128xf32>
      %71 = arith.addf %64, %70 : vector<1x8x128xf32>
      %c0_56 = arith.constant 0 : index
      %c0_57 = arith.constant 0 : index
      %c0_58 = arith.constant 0 : index
      %72 = vector.load %arg6[%c0_56, %c0_57, %c0_58] : memref<1x8x128xf32, #tpu.memory_space<vmem>>, vector<1x8x128xf32>
      tpu.vector_store %arg6[%c0_56, %c0_57, %c0_58], %71 {strides = array<i32>} : memref<1x8x128xf32, #tpu.memory_space<vmem>>, vector<1x8x128xf32>,
    } else {
    }
    return
  }
  func.func @transform_0(%arg0: i32, %arg1: i32) -> (i32, i32, i32) {
    %c0_i32 = arith.constant 0 : i32
    %c0_i32_0 = arith.constant 0 : i32
    return %arg0, %c0_i32, %arg1 : i32, i32, i32
  }
  func.func @transform_1(%arg0: i32, %arg1: i32) -> (i32, i32, i32) {
    %c0_i32 = arith.constant 0 : i32
    %c0_i32_0 = arith.constant 0 : i32
    return %arg0, %c0_i32, %arg1 : i32, i32, i32
  }
  func.func @transform_2(%arg0: i32, %arg1: i32) -> (i32, i32, i32) {
    %c0_i32 = arith.constant 0 : i32
    %c0_i32_0 = arith.constant 0 : i32
    return %arg0, %c0_i32, %arg1 : i32, i32, i32
  }
  func.func @transform_3(%arg0: i32, %arg1: i32) -> (i32, i32, i32) {
    %c0_i32 = arith.constant 0 : i32
    %c0_i32_0 = arith.constant 0 : i32
    %c0_i32_1 = arith.constant 0 : i32
    return %arg0, %c0_i32, %c0_i32_0 : i32, i32, i32
  }
  func.func @transform_4(%arg0: i32, %arg1: i32) -> (i32, i32, i32) {
    %c0_i32 = arith.constant 0 : i32
    %c0_i32_0 = arith.constant 0 : i32
    %c0_i32_1 = arith.constant 0 : i32
    return %arg0, %c0_i32, %c0_i32_0 : i32, i32, i32
  }
}

</mosaic_0001>

<llo_original>
// kernel: tpu_custom_call.1
$region0: #{tpu_custom_call.1}
  #allocation0 [shape = 'u32[]', space=smem, size = 0x4, offset = 0x4, fixed_abs, tag = 'smem constant byte address 0x4 - core index']
  #allocation1 [shape = 'u32[72,128]{1,0:T(1,128)}', space=vmem, size = 0x9000, scoped, tag = 'internal scratch']
  #allocation2 [shape = 'f32[8,8]{1,0:T(8,128)}', space=vmem, size = 0x1000, scoped, tag = 'scratch operand']
  #allocation3 [shape = 'f32[8,8]{1,0:T(8,128)}', space=vmem, size = 0x1000, scoped, tag = 'scratch operand']
  #allocation4 [shape = 'f32[8,1]{1,0:T(8,128)}', space=vmem, size = 0x1000, scoped, tag = 'scratch operand']
  #allocation5 [shape = 'f32[8,1]{1,0:T(8,128)}', space=vmem, size = 0x1000, scoped, tag = 'scratch operand']
  #allocation6 [shape = 'f32[8,1]{1,0:T(8,128)}', space=vmem, size = 0x1000, scoped, tag = 'scratch operand']
  %s0 = inlined_call_operand.hbm [shape: f32[2,8,64], index: 0, kind: input, shape index: {}]
  %s1 = inlined_call_operand.hbm [shape: f32[2,8,64], index: 1, kind: input, shape index: {}]
  %s2 = inlined_call_operand.hbm [shape: f32[2,8,64], index: 2, kind: input, shape index: {}]
  %s3 = inlined_call_operand.hbm [shape: f32[2,8,128], index: 3, kind: output, shape index: {0}]
  %s4 = inlined_call_operand.hbm [shape: f32[2,8,128], index: 4, kind: output, shape index: {1}]
  %5 = xla_tuple %s3, %s4
  %s6 = sld [smem:[#allocation0]]
  $region73: #{tpu_custom_call.1} parent=0
    _
  %s8 = ssub.s32 1, %s6
  %s9 = scalar_select 0, %s8, %s6
  $region1: #{tpu_custom_call.1} parent=0
    #allocation7 [shape = 'u8[8192]{0}', space=vmem, size = 0x2000, scoped, tag = 'input window, operand 0']
    #allocation8 [shape = 's32[2]{0}', space=sflag, size = 0x8, scoped, tag = 'scoped memory for tpu_custom_call.1']
    #allocation9 [shape = 's32[2]{0}', space=sflag, size = 0x8, scoped, tag = 'scoped memory for tpu_custom_call.1']
    #allocation10 [shape = 'u8[8192]{0}', space=vmem, size = 0x2000, scoped, tag = 'input window, operand 1']
    #allocation11 [shape = 's32[2]{0}', space=sflag, size = 0x8, scoped, tag = 'scoped memory for tpu_custom_call.1']
    #allocation12 [shape = 'u8[8192]{0}', space=vmem, size = 0x2000, scoped, tag = 'input window, operand 2']
    #allocation13 [shape = 'u8[8192]{0}', space=vmem, size = 0x2000, scoped, tag = 'output window, operand 0']
    #allocation14 [shape = 'u8[8192]{0}', space=vmem, size = 0x2000, scoped, tag = 'output window, operand 1']
    #allocation15 [shape = 's32[2]{0}', space=sflag, size = 0x8, scoped, tag = 'scoped memory for tpu_custom_call.1']
    %10 = vsyncpa [#allocation8], 0
    %s11 = scalar_lea.sflag [#allocation8], 1
    %12 = vsyncpa %s11, 0
    %13 = vsyncpa [#allocation11], 0
    %s14 = scalar_lea.sflag [#allocation11], 1
    %15 = vsyncpa %s14, 0
    %16 = vsyncpa [#allocation9], 0
    %s17 = scalar_lea.sflag [#allocation9], 1
    %18 = vsyncpa %s17, 0
    %19 = vsyncpa [#allocation15], 0
    %s20 = scalar_lea.sflag [#allocation15], 1
    %21 = vsyncpa %s20, 0
    loop: start=0, step=1, limit=4
    $region2: #{tpu_custom_call.1} parent=1 // loop_pre_header
      _
    $region3: #{tpu_custom_call.1} parent=1 // loop_header
      %s23 = sphi 0, %s27
      %p24 = scmp.ge.s32.totalorder %s23, 4
      %s30 = sphi 0, %s42
      %s31 = sphi 0, %s38
      %s32 = sphi 0, %s30
      %s33 = sphi 0, %s31
      %s34 = sphi 0, %s32
      %s35 = sphi 0, %s33
      %s47 = sphi 0, %s49
      %s50 = sphi 0, %s47
      %s51 = sphi 0, %s50
      %s67 = sphi 0, %s51
      %s75 = sphi 0, %s77
      %s78 = sphi 0, %s75
      %s79 = sphi 0, %s78
      %s95 = sphi 0, %s79
      %s103 = sphi 0, %s105
      %s106 = sphi 0, %s103
      %s107 = sphi 0, %s106
      %s123 = sphi 0, %s107
      %s129 = sphi 0, %s131
      %s132 = sphi 0, %s129
      %s133 = sphi 0, %s132
      %s149 = sphi 0, %s133
      %s155 = sphi 0, %s157
      %s158 = sphi 0, %s155
      %s159 = sphi 0, %s158
      %s175 = sphi 0, %s159
    $region4: #{tpu_custom_call.1} parent=1 // loop_header_branch
      %26 = sbr.rel (%p24) target = $region8
    $region5: #{tpu_custom_call.1} parent=1 // loop_body
      %s28 = ssub.s32 %s23, 1
      %s29 = ssub.s32 %s23, 2
      %s36 = sadd.s32 1, %s31
      %p37 = scmp.ge.s32.totalorder %s36, 1
      %s38 = scalar_select %p37, 0, %s36
      %s39 = sadd.s32 1, %s30
      %s40 = scalar_select %p37, %s39, %s30
      %p41 = scmp.ge.s32.totalorder %s40, 2
      %s42 = scalar_select %p41, 0, %s40
      %s43 = ssub.s32 %s30, %s42
      %s44 = ssub.s32 %s31, %s38
      %s45 = sor.u32 %s43, %s44
      %p46 = scmp.eq.s32.totalorder %s45, 0
      %s48 = sadd.s32 %s47, 1
      %s49 = scalar_select %p46, %s47, %s48
      %p52 = pneg %p46
      %p53 = scmp.eq.s32.totalorder %s23, 1
      %p54 = por %p52, %p53
      %p55 = scmp.ne.s32.totalorder %s47, %s50
      %p56 = scmp.eq.s32.totalorder %s23, 0
      %p57 = por %p55, %p56
      %p58 = scmp.ne.s32.totalorder %s47, %s50
      %p59 = scmp.eq.s32.totalorder %s28, 1
      %p60 = por %p58, %p59
      %p61 = scmp.ne.s32.totalorder %s50, %s51
      %p62 = scmp.eq.s32.totalorder %s28, 0
      %p63 = por %p61, %p62
      %p64 = scmp.ne.s32.totalorder %s50, %s51
      %p65 = scmp.eq.s32.totalorder %s29, 1
      %p66 = por %p64, %p65
      %p68 = scmp.ne.s32.totalorder %s51, %s67
      %p69 = scmp.eq.s32.totalorder %s29, 0
      %p70 = por %p68, %p69
      %s71 = ssub.s32 %s30, %s42
      %s72 = ssub.s32 %s31, %s38
      %s73 = sor.u32 %s71, %s72
      %p74 = scmp.eq.s32.totalorder %s73, 0
      %s76 = sadd.s32 %s75, 1
      %s77 = scalar_select %p74, %s75, %s76
      %p80 = pneg %p74
      %p81 = scmp.eq.s32.totalorder %s23, 1
      %p82 = por %p80, %p81
      %p83 = scmp.ne.s32.totalorder %s75, %s78
      %p84 = scmp.eq.s32.totalorder %s23, 0
      %p85 = por %p83, %p84
      %p86 = scmp.ne.s32.totalorder %s75, %s78
      %p87 = scmp.eq.s32.totalorder %s28, 1
      %p88 = por %p86, %p87
      %p89 = scmp.ne.s32.totalorder %s78, %s79
      %p90 = scmp.eq.s32.totalorder %s28, 0
      %p91 = por %p89, %p90
      %p92 = scmp.ne.s32.totalorder %s78, %s79
      %p93 = scmp.eq.s32.totalorder %s29, 1
      %p94 = por %p92, %p93
      %p96 = scmp.ne.s32.totalorder %s79, %s95
      %p97 = scmp.eq.s32.totalorder %s29, 0
      %p98 = por %p96, %p97
      %s99 = ssub.s32 %s30, %s42
      %s100 = ssub.s32 %s31, %s38
      %s101 = sor.u32 %s99, %s100
      %p102 = scmp.eq.s32.totalorder %s101, 0
      %s104 = sadd.s32 %s103, 1
      %s105 = scalar_select %p102, %s103, %s104
      %p108 = pneg %p102
      %p109 = scmp.eq.s32.totalorder %s23, 1
      %p110 = por %p108, %p109
      %p111 = scmp.ne.s32.totalorder %s103, %s106
      %p112 = scmp.eq.s32.totalorder %s23, 0
      %p113 = por %p111, %p112
      %p114 = scmp.ne.s32.totalorder %s103, %s106
      %p115 = scmp.eq.s32.totalorder %s28, 1
      %p116 = por %p114, %p115
      %p117 = scmp.ne.s32.totalorder %s106, %s107
      %p118 = scmp.eq.s32.totalorder %s28, 0
      %p119 = por %p117, %p118
      %p120 = scmp.ne.s32.totalorder %s106, %s107
      %p121 = scmp.eq.s32.totalorder %s29, 1
      %p122 = por %p120, %p121
      %p124 = scmp.ne.s32.totalorder %s107, %s123
      %p125 = scmp.eq.s32.totalorder %s29, 0
      %p126 = por %p124, %p125
      %s127 = ssub.s32 %s30, %s42
      %p128 = scmp.eq.s32.totalorder %s127, 0
      %s130 = sadd.s32 %s129, 1
      %s131 = scalar_select %p128, %s129, %s130
      %p134 = pneg %p128
      %p135 = scmp.eq.s32.totalorder %s23, 1
      %p136 = por %p134, %p135
      %p137 = scmp.ne.s32.totalorder %s129, %s132
      %p138 = scmp.eq.s32.totalorder %s23, 0
      %p139 = por %p137, %p138
      %p140 = scmp.ne.s32.totalorder %s129, %s132
      %p141 = scmp.eq.s32.totalorder %s28, 1
      %p142 = por %p140, %p141
      %p143 = scmp.ne.s32.totalorder %s132, %s133
      %p144 = scmp.eq.s32.totalorder %s28, 0
      %p145 = por %p143, %p144
      %p146 = scmp.ne.s32.totalorder %s132, %s133
      %p147 = scmp.eq.s32.totalorder %s29, 1
      %p148 = por %p146, %p147
      %p150 = scmp.ne.s32.totalorder %s133, %s149
      %p151 = scmp.eq.s32.totalorder %s29, 0
      %p152 = por %p150, %p151
      %s153 = ssub.s32 %s30, %s42
      %p154 = scmp.eq.s32.totalorder %s153, 0
      %s156 = sadd.s32 %s155, 1
      %s157 = scalar_select %p154, %s155, %s156
      %p160 = pneg %p154
      %p161 = scmp.eq.s32.totalorder %s23, 1
      %p162 = por %p160, %p161
      %p163 = scmp.ne.s32.totalorder %s155, %s158
      %p164 = scmp.eq.s32.totalorder %s23, 0
      %p165 = por %p163, %p164
      %p166 = scmp.ne.s32.totalorder %s155, %s158
      %p167 = scmp.eq.s32.totalorder %s28, 1
      %p168 = por %p166, %p167
      %p169 = scmp.ne.s32.totalorder %s158, %s159
      %p170 = scmp.eq.s32.totalorder %s28, 0
      %p171 = por %p169, %p170
      %p172 = scmp.ne.s32.totalorder %s158, %s159
      %p173 = scmp.eq.s32.totalorder %s29, 1
      %p174 = por %p172, %p173
      %p176 = scmp.ne.s32.totalorder %s159, %s175
      %p177 = scmp.eq.s32.totalorder %s29, 0
      %p178 = por %p176, %p177
      %p179 = scmp.le.s32.totalorder 1, %s23
      %p180 = scmp.lt.s32.totalorder %s23, 3
      %p181 = pnand %p179, %p180
      %p182 = pneg %p181
      // Predicated region
      $region9: #{tpu_custom_call.1} parent=5 // pred_check
        _
      $region10: #{tpu_custom_call.1} parent=5 // pred_check_branch
        %184 = sbr.rel (%p181) target = $region12
      $region11: #{tpu_custom_call.1} parent=5 // pred_region
        %s185 = ssub.s32 %s23, 1
      $region12: #{tpu_custom_call.1} parent=5 // pred_fallthru
        _
      %p186 = scmp.lt.s32.totalorder %s23, 2
      // Predicated region
      $region13: #{tpu_custom_call.1} parent=5 // pred_check
        %p187 = pneg %p186
      $region14: #{tpu_custom_call.1} parent=5 // pred_check_branch
        %189 = sbr.rel (%p187) target = $region16
      $region15: #{tpu_custom_call.1} parent=5 // pred_region
        // Predicated region
        $region17: #{tpu_custom_call.1} parent=15 // pred_check
          %p190 = pneg %p57
        $region18: #{tpu_custom_call.1} parent=15 // pred_check_branch
          %192 = sbr.rel (%p190) target = $region20
        $region19: #{tpu_custom_call.1} parent=15 // pred_region
          %s193 = sand.u32 %s47, 1
          %s194 = scalar_lea.sflag [#allocation8], %s193
          %s195 = sand.u32 %s47, 1
          %s196 = smul.addr %s195, 8
          %s197 = scalar_lea.vmem [#allocation7], %s196
          %199 = vsyncadd %s194, 0
          %s200 = sadd.s32 %s31, %s30
          %s201 = smul.addr %s200, 8
          %s202 = scalar_lea.hbm %s0, %s201
          %s204 = sshll.u32 %s202, 4
          %s205 = int_to_ptr.hbm [resolvable:$true] %s204
          %s206 = sshll.u32 %s197, 4
          %s207 = int_to_ptr.vmem [resolvable:$true] %s206
          %209 = dma.hbm_to_vmem [thread:$0]  %s205, 128, %s207, %s194
        $region20: #{tpu_custom_call.1} parent=15 // pred_fallthru
          _
        // Predicated region
        $region21: #{tpu_custom_call.1} parent=15 // pred_check
          %p210 = pneg %p85
        $region22: #{tpu_custom_call.1} parent=15 // pred_check_branch
          %212 = sbr.rel (%p210) target = $region24
        $region23: #{tpu_custom_call.1} parent=15 // pred_region
          %s213 = sand.u32 %s23, 1
          %s214 = scalar_lea.sflag [#allocation11], %s213
          %s215 = sand.u32 %s75, 1
          %s216 = smul.addr %s215, 8
          %s217 = scalar_lea.vmem [#allocation10], %s216
          %219 = vsyncadd %s214, 0
          %s220 = sadd.s32 %s31, %s30
          %s221 = smul.addr %s220, 8
          %s222 = scalar_lea.hbm %s1, %s221
          %s224 = sshll.u32 %s222, 4
          %s225 = int_to_ptr.hbm [resolvable:$true] %s224
          %s226 = sshll.u32 %s217, 4
          %s227 = int_to_ptr.vmem [resolvable:$true] %s226
          %229 = dma.hbm_to_vmem [thread:$0]  %s225, 128, %s227, %s214
        $region24: #{tpu_custom_call.1} parent=15 // pred_fallthru
          _
        // Predicated region
        $region25: #{tpu_custom_call.1} parent=15 // pred_check
          %p230 = pneg %p113
        $region26: #{tpu_custom_call.1} parent=15 // pred_check_branch
          %232 = sbr.rel (%p230) target = $region28
        $region27: #{tpu_custom_call.1} parent=15 // pred_region
          %s233 = sand.u32 %s23, 1
          %s234 = scalar_lea.sflag [#allocation11], %s233
          %s235 = sand.u32 %s103, 1
          %s236 = smul.addr %s235, 8
          %s237 = scalar_lea.vmem [#allocation12], %s236
          %239 = vsyncadd %s234, 0
          %s240 = sadd.s32 %s31, %s30
          %s241 = smul.addr %s240, 8
          %s242 = scalar_lea.hbm %s2, %s241
          %s244 = sshll.u32 %s242, 4
          %s245 = int_to_ptr.hbm [resolvable:$true] %s244
          %s246 = sshll.u32 %s237, 4
          %s247 = int_to_ptr.vmem [resolvable:$true] %s246
          %249 = dma.hbm_to_vmem [thread:$0]  %s245, 128, %s247, %s234
        $region28: #{tpu_custom_call.1} parent=15 // pred_fallthru
          _
      $region16: #{tpu_custom_call.1} parent=5 // pred_fallthru
        _
      %p250 = scmp.le.s32.totalorder 1, %s23
      %p251 = scmp.lt.s32.totalorder %s23, 3
      %p252 = pnand %p250, %p251
      %p253 = pneg %p252
      // Predicated region
      $region29: #{tpu_custom_call.1} parent=5 // pred_check
        _
      $region30: #{tpu_custom_call.1} parent=5 // pred_check_branch
        %255 = sbr.rel (%p252) target = $region32
      $region31: #{tpu_custom_call.1} parent=5 // pred_region
        %s256 = ssub.s32 %s23, 1
        %s257 = sand.u32 %s50, 1
        %s258 = scalar_lea.sflag [#allocation8], %s257
        %s259 = sand.u32 %s50, 1
        %s260 = smul.addr %s259, 8
        %s261 = scalar_lea.vmem [#allocation7], %s260
        // Predicated region
        $region33: #{tpu_custom_call.1} parent=31 // pred_check
          %p262 = pneg %p63
        $region34: #{tpu_custom_call.1} parent=31 // pred_check_branch
          %264 = sbr.rel (%p262) target = $region36
        $region35: #{tpu_custom_call.1} parent=31 // pred_region
          %266 = dma.done %s258, 128
        $region36: #{tpu_custom_call.1} parent=31 // pred_fallthru
          _
        %s267 = sand.u32 %s28, 1
        %s268 = scalar_lea.sflag [#allocation11], %s267
        %s269 = sand.u32 %s78, 1
        %s270 = smul.addr %s269, 8
        %s271 = scalar_lea.vmem [#allocation10], %s270
        // Predicated region
        $region37: #{tpu_custom_call.1} parent=31 // pred_check
          %p272 = pneg %p91
        $region38: #{tpu_custom_call.1} parent=31 // pred_check_branch
          %274 = sbr.rel (%p272) target = $region40
        $region39: #{tpu_custom_call.1} parent=31 // pred_region
          %276 = dma.done %s268, 128
        $region40: #{tpu_custom_call.1} parent=31 // pred_fallthru
          _
        %s277 = sand.u32 %s28, 1
        %s278 = scalar_lea.sflag [#allocation11], %s277
        %s279 = sand.u32 %s106, 1
        %s280 = smul.addr %s279, 8
        %s281 = scalar_lea.vmem [#allocation12], %s280
        // Predicated region
        $region41: #{tpu_custom_call.1} parent=31 // pred_check
          %p282 = pneg %p119
        $region42: #{tpu_custom_call.1} parent=31 // pred_check_branch
          %284 = sbr.rel (%p282) target = $region44
        $region43: #{tpu_custom_call.1} parent=31 // pred_region
          %286 = dma.done %s278, 128
        $region44: #{tpu_custom_call.1} parent=31 // pred_fallthru
          _
        %s287 = sand.u32 %s50, 1
        %s288 = scalar_lea.sflag [#allocation8], %s287
        %s289 = sand.u32 %s50, 1
        %s290 = smul.addr %s289, 8
        %s291 = scalar_lea.vmem [#allocation7], %s290
        %p292 = pneg %p63
        %p293 = pneg %p60
        %s294 = sand.u32 %s28, 1
        %s295 = scalar_lea.sflag [#allocation11], %s294
        %s296 = sand.u32 %s78, 1
        %s297 = smul.addr %s296, 8
        %s298 = scalar_lea.vmem [#allocation10], %s297
        %p299 = pneg %p91
        %p300 = pneg %p88
        %s301 = sand.u32 %s28, 1
        %s302 = scalar_lea.sflag [#allocation11], %s301
        %s303 = sand.u32 %s106, 1
        %s304 = smul.addr %s303, 8
        %s305 = scalar_lea.vmem [#allocation12], %s304
        %p306 = pneg %p119
        %p307 = pneg %p116
        %p308 = pneg %p145
        %p309 = pneg %p142
        %s310 = sand.u32 %s132, 1
        %s311 = scalar_lea.sflag [#allocation9], %s310
        %s312 = sand.u32 %s132, 1
        %s313 = smul.addr %s312, 8
        %s314 = scalar_lea.vmem [#allocation13], %s313
        %p315 = pneg %p171
        %p316 = pneg %p168
        %s317 = sand.u32 %s158, 1
        %s318 = scalar_lea.sflag [#allocation15], %s317
        %s319 = sand.u32 %s158, 1
        %s320 = smul.addr %s319, 8
        %s321 = scalar_lea.vmem [#allocation14], %s320
        %p322 = scmp.eq.s32.totalorder %s33, 0
        // Predicated region
        $region45: #{tpu_custom_call.1} parent=31 // pred_check
          %p323 = pneg %p322
        $region46: #{tpu_custom_call.1} parent=31 // pred_check_branch
          %325 = sbr.rel (%p323) target = $region48
        $region47: #{tpu_custom_call.1} parent=31 // pred_region
          %vm326 = vcmask 64512
          %327 = vst.msk [vmem:[#allocation2] sm:$0xff] %vm326, 0.0
          %328 = vst.msk [vmem:[#allocation3] sm:$0xff] %vm326, 0.0
          %vm329 = vcmask 7168
          %330 = vst.msk [vmem:[#allocation4] sm:$0xff] %vm329, 0.0
          %331 = vst.msk [vmem:[#allocation5] sm:$0xff] %vm329, 0.0
          %332 = vst.msk [vmem:[#allocation6] sm:$0xff] %vm329, 0.0
        $region48: #{tpu_custom_call.1} parent=31 // pred_fallthru
          _
        %v333 = vld [vmem:[%s261] sm:$0xff]
        %v334 = vld [vmem:[%s271] sm:$0xff]
        %v335 = vld [vmem:[%s281] sm:$0xff]
        %v336 = vld [vmem:[#allocation2] sm:$0xff]
        %vm337 = vcmask 523264
        %v339 = vsel %vm337, %v333, 0
        %341 = vmatpush.xpose.msra.mxu0 0.0
        %342 = vmatpush.xpose.msra.mxu0 0.0
        %343 = vmatpush.xpose.msra.mxu0 0.0
        %344 = vmatpush.xpose.msra.mxu0 0.0
        %345 = vmatpush.xpose.msra.mxu0 0.0
        %346 = vmatpush.xpose.msra.mxu0 0.0
        %347 = vmatpush.xpose.msra.mxu0 0.0
        %348 = vmatpush.xpose.msra.mxu0 0.0
        %349 = vmatpush.xpose.msra.mxu0 0.0
        %350 = vmatpush.xpose.msra.mxu0 0.0
        %351 = vmatpush.xpose.msra.mxu0 0.0
        %352 = vmatpush.xpose.msra.mxu0 0.0
        %353 = vmatpush.xpose.msra.mxu0 0.0
        %354 = vmatpush.xpose.msra.mxu0 0.0
        %355 = vmatpush.xpose.msra.mxu0 0.0
        %356 = vmatpush.xpose.msra.mxu0 %v339
        %357 = vmatmul.f32.gmra.mxu0 %v339
        %v358 = vpop.f32.mrf.mxu0
        %v359 = vadd.f32 0.0, %v358
        %360 = vdwg.mxu0
        %v361 = vadd.f32 %v336, %v359
        %vm362 = vcmask 64512
        %363 = vst.msk [vmem:[#allocation2] sm:$0xff] %vm362, %v361
        %v364 = vld [vmem:[#allocation3] sm:$0xff]
        %v366 = vsel %vm337, %v334, 0
        %368 = vmatpush.xpose.msra.mxu0 0.0
        %369 = vmatpush.xpose.msra.mxu0 0.0
        %370 = vmatpush.xpose.msra.mxu0 0.0
        %371 = vmatpush.xpose.msra.mxu0 0.0
        %372 = vmatpush.xpose.msra.mxu0 0.0
        %373 = vmatpush.xpose.msra.mxu0 0.0
        %374 = vmatpush.xpose.msra.mxu0 0.0
        %375 = vmatpush.xpose.msra.mxu0 0.0
        %376 = vmatpush.xpose.msra.mxu0 0.0
        %377 = vmatpush.xpose.msra.mxu0 0.0
        %378 = vmatpush.xpose.msra.mxu0 0.0
        %379 = vmatpush.xpose.msra.mxu0 0.0
        %380 = vmatpush.xpose.msra.mxu0 0.0
        %381 = vmatpush.xpose.msra.mxu0 0.0
        %382 = vmatpush.xpose.msra.mxu0 0.0
        %383 = vmatpush.xpose.msra.mxu0 %v366
        %384 = vmatmul.f32.gmra.mxu0 %v366
        %v385 = vpop.f32.mrf.mxu0
        %v386 = vadd.f32 0.0, %v385
        %387 = vdwg.mxu0
        %v388 = vadd.f32 %v364, %v386
        %389 = vst.msk [vmem:[#allocation3] sm:$0xff] %vm362, %v388
        %v390 = vld [vmem:[#allocation4] sm:$0xff]
        %v391 = vsel %vm337, %v333, 0.0
        %392 = vadd.xlane.f32.xlu0 %v391
        %v393 = vpop.xlane.xlu0 %392
        %v394 = vadd.f32 %v390, %v393
        %vm395 = vcmask 7168
        %396 = vst.msk [vmem:[#allocation4] sm:$0xff] %vm395, %v394
        %v397 = vld [vmem:[#allocation5] sm:$0xff]
        %v398 = vsel %vm337, %v334, 0.0
        %399 = vadd.xlane.f32.xlu0 %v398
        %v400 = vpop.xlane.xlu0 %399
        %v401 = vadd.f32 %v397, %v400
        %402 = vst.msk [vmem:[#allocation5] sm:$0xff] %vm395, %v401
        %v403 = vsub.f32 %v333, %v335
        %v404 = vld [vmem:[#allocation6] sm:$0xff]
        %v405 = vmul.f32 %v403, %v403
        %v406 = vsel %vm337, %v405, 0.0
        %407 = vadd.xlane.f32.xlu0 %v406
        %v408 = vpop.xlane.xlu0 %407
        %v409 = vadd.f32 %v404, %v408
        %410 = vst.msk [vmem:[#allocation6] sm:$0xff] %vm395, %v409
        // Predicated region
        $region49: #{tpu_custom_call.1} parent=31 // pred_check
          %p411 = pneg %p322
        $region50: #{tpu_custom_call.1} parent=31 // pred_check_branch
          %413 = sbr.rel (%p411) target = $region52
        $region51: #{tpu_custom_call.1} parent=31 // pred_region
          %v414 = vld [vmem:[#allocation4] sm:$0xff]
          %v415 = vld [vmem:[#allocation5] sm:$0xff]
          %v416 = vsub.f32 %v414, %v415
          %v417 = vadd.f32 %v416, 0.0
          %v418 = vmul.f32 %v417, 0.015625
          %v419 = vld [vmem:[#allocation2] sm:$0xff]
          %v420 = vld [vmem:[#allocation3] sm:$0xff]
          %v421 = vsub.f32 %v419, %v420
          %v422 = vmul.f32 %v421, 0.001953125
          %v423 = vmul.f32 %v418, %v418
          %v424 = vsel %vm395, %v423, 0.0
          %425 = vadd.xlane.f32.xlu0 %v424
          %v426 = vpop.xlane.xlu0 %425
          %v427 = vrot.slane %v426, 4
          %v428 = vadd.f32 %v426, %v427
          %v429 = vrot.slane %v428, 2
          %v430 = vadd.f32 %v428, %v429
          %v431 = vrot.slane %v430, 1
          %v432 = vadd.f32 %v430, %v431
          %s433 = vtos %v432
          %v434 = vmul.f32 %v422, %v422
          %v435 = vsel %vm362, %v434, 0.0
          %436 = vadd.xlane.f32.xlu0 %v435
          %v437 = vpop.xlane.xlu0 %436
          %v438 = vrot.slane %v437, 4
          %v439 = vadd.f32 %v437, %v438
          %v440 = vrot.slane %v439, 2
          %v441 = vadd.f32 %v439, %v440
          %v442 = vrot.slane %v441, 1
          %v443 = vadd.f32 %v441, %v442
          %s444 = vtos %v443
          %s445 = sadd.f32 %s433, %s444
          %v446 = vstv %s445
          %v447 = vadd.f32 %v446, 0.0
          %448 = vst [vmem:[%s314] sm:$0xff] %v447
          %v449 = vld [vmem:[#allocation6] sm:$0xff]
          %v450 = vsel %vm395, %v449, 0.0
          %451 = vadd.xlane.f32.xlu0 %v450
          %v452 = vpop.xlane.xlu0 %451
          %v453 = vrot.slane %v452, 4
          %v454 = vadd.f32 %v452, %v453
          %v455 = vrot.slane %v454, 2
          %v456 = vadd.f32 %v454, %v455
          %v457 = vrot.slane %v456, 1
          %v458 = vadd.f32 %v456, %v457
          %s459 = vtos %v458
          %v460 = vstv %s459
          %v461 = vadd.f32 %v460, 0.0
          %462 = vst [vmem:[%s321] sm:$0xff] %v461
        $region52: #{tpu_custom_call.1} parent=31 // pred_fallthru
          _
        %s463 = sand.u32 %s132, 1
        %s464 = scalar_lea.sflag [#allocation9], %s463
        %s465 = sand.u32 %s132, 1
        %s466 = smul.addr %s465, 8
        %s467 = scalar_lea.vmem [#allocation13], %s466
        %s468 = sand.u32 %s158, 1
        %s469 = scalar_lea.sflag [#allocation15], %s468
        %s470 = sand.u32 %s158, 1
        %s471 = smul.addr %s470, 8
        %s472 = scalar_lea.vmem [#allocation14], %s471
        // Predicated region
        $region53: #{tpu_custom_call.1} parent=31 // pred_check
          %p473 = pneg %p142
        $region54: #{tpu_custom_call.1} parent=31 // pred_check_branch
          %475 = sbr.rel (%p473) target = $region56
        $region55: #{tpu_custom_call.1} parent=31 // pred_region
          %477 = vsyncadd %s464, 0
          %s478 = smul.addr %s32, 8
          %s479 = scalar_lea.hbm %s3, %s478
          %s481 = sshll.u32 %s467, 4
          %s482 = int_to_ptr.vmem [resolvable:$true] %s481
          %s483 = sshll.u32 %s479, 4
          %s484 = int_to_ptr.hbm [resolvable:$true] %s483
          %486 = dma.vmem_to_hbm [thread:$0]  %s482, 128, %s484, %s464
        $region56: #{tpu_custom_call.1} parent=31 // pred_fallthru
          _
        // Predicated region
        $region57: #{tpu_custom_call.1} parent=31 // pred_check
          %p487 = pneg %p168
        $region58: #{tpu_custom_call.1} parent=31 // pred_check_branch
          %489 = sbr.rel (%p487) target = $region60
        $region59: #{tpu_custom_call.1} parent=31 // pred_region
          %491 = vsyncadd %s469, 0
          %s492 = smul.addr %s32, 8
          %s493 = scalar_lea.hbm %s4, %s492
          %s495 = sshll.u32 %s472, 4
          %s496 = int_to_ptr.vmem [resolvable:$true] %s495
          %s497 = sshll.u32 %s493, 4
          %s498 = int_to_ptr.hbm [resolvable:$true] %s497
          %500 = dma.vmem_to_hbm [thread:$0]  %s496, 128, %s498, %s469
        $region60: #{tpu_custom_call.1} parent=31 // pred_fallthru
          _
      $region32: #{tpu_custom_call.1} parent=5 // pred_fallthru
        _
      %p501 = scmp.le.s32.totalorder 2, %s23
      // Predicated region
      $region61: #{tpu_custom_call.1} parent=5 // pred_check
        %p502 = pneg %p501
      $region62: #{tpu_custom_call.1} parent=5 // pred_check_branch
        %504 = sbr.rel (%p502) target = $region64
      $region63: #{tpu_custom_call.1} parent=5 // pred_region
        %s505 = ssub.s32 %s23, 2
        // Predicated region
        $region65: #{tpu_custom_call.1} parent=63 // pred_check
          %p506 = pneg %p148
        $region66: #{tpu_custom_call.1} parent=63 // pred_check_branch
          %508 = sbr.rel (%p506) target = $region68
        $region67: #{tpu_custom_call.1} parent=63 // pred_region
          %s509 = sand.u32 %s133, 1
          %s510 = scalar_lea.sflag [#allocation9], %s509
          %s511 = sand.u32 %s133, 1
          %s512 = smul.addr %s511, 8
          %s513 = scalar_lea.vmem [#allocation13], %s512
          %515 = dma.done %s510, 128
        $region68: #{tpu_custom_call.1} parent=63 // pred_fallthru
          _
        // Predicated region
        $region69: #{tpu_custom_call.1} parent=63 // pred_check
          %p516 = pneg %p174
        $region70: #{tpu_custom_call.1} parent=63 // pred_check_branch
          %518 = sbr.rel (%p516) target = $region72
        $region71: #{tpu_custom_call.1} parent=63 // pred_region
          %s519 = sand.u32 %s159, 1
          %s520 = scalar_lea.sflag [#allocation15], %s519
          %s521 = sand.u32 %s159, 1
          %s522 = smul.addr %s521, 8
          %s523 = scalar_lea.vmem [#allocation14], %s522
          %525 = dma.done %s520, 128
        $region72: #{tpu_custom_call.1} parent=63 // pred_fallthru
          _
      $region64: #{tpu_custom_call.1} parent=5 // pred_fallthru
        _
    $region6: #{tpu_custom_call.1} parent=1 // loop_footer
      %s27 = sadd.s32 1, %s23
    $region7: #{tpu_custom_call.1} parent=1 // loop_footer_branch
      %22 = sbr.rel target = $region3
    $region8: #{tpu_custom_call.1} parent=1 // loop_exit
      _
    %526 = vsyncpa [#allocation8], 1
    %s527 = scalar_lea.sflag [#allocation8], 1
    %528 = vsyncpa %s527, 1
    %529 = vsyncpa [#allocation11], 1
    %s530 = scalar_lea.sflag [#allocation11], 1
    %531 = vsyncpa %s530, 1
    %532 = vsyncpa [#allocation9], 1
    %s533 = scalar_lea.sflag [#allocation9], 1
    %534 = vsyncpa %s533, 1
    %535 = vsyncpa [#allocation15], 1
    %s536 = scalar_lea.sflag [#allocation15], 1
    %537 = vsyncpa %s536, 1

</llo_original>
